<compile_context>
chip_gen: v7x
topology: tpu7x:2x2x1
jax: 0.10.0
libtpu: 0.0.40
codegen_flags: <defaults>
</compile_context>

<pallas_src>
import functools

import jax
import jax.numpy as jnp
from jax.experimental import pallas as pl
from jax.experimental.pallas import tpu as pltpu

_LANE = 128
_SUBLANE = 8


def _round_up(n, m):
    return ((n + m - 1) // m) * m


# ----------------------------- kernels -----------------------------

def _fused_small_kernel(x_ref, w1_ref, b1_ref, w2_ref, b2_ref, out_ref,
                        *, n_clips, rows):
    """No-grid invocation; everything VMEM resident.

    x_ref : (n_clips*rows, D)          rows is a multiple of 8
    w1_ref: (D, Hp)    b1_ref: (1, Hp)
    w2_ref: (Hp, Cp)   b2_ref: (1, Cp)   (w2 already scaled by 1/n_clips)
    out_ref: (rows, Cp)
    """
    h = jnp.dot(x_ref[...], w1_ref[...],
                preferred_element_type=jnp.float32) + b1_ref[...]
    h = jnp.maximum(h, 0.0)                                      # ReLU

    # Mean over clips commutes with layer 2: sum hidden activations first.
    hsum = h[0:rows, :]
    for c in range(1, n_clips):                                  # static, vreg-aligned
        hsum = hsum + h[c * rows:(c + 1) * rows, :]

    out = jnp.dot(hsum, w2_ref[...],
                  preferred_element_type=jnp.float32) + b2_ref[...]
    out_ref[...] = out.astype(out_ref.dtype)


def _fused_tiled_kernel(x_ref, w1_ref, b1_ref, w2_ref, b2_ref, out_ref, hsum_ref):
    """Grid = (row_tiles, n_clips); clip axis is the reduction ("arbitrary").

    x_ref : (TB, D) tile of the current clip
    hsum_ref: (TB, Hp) f32 accumulator (persists across the clip axis)
    out_ref : (TB, Cp), written only at the last clip.
    """
    c = pl.program_id(1)

    @pl.when(c == 0)
    def _():
        hsum_ref[...] = jnp.zeros_like(hsum_ref)

    h = jnp.dot(x_ref[...], w1_ref[...],
                preferred_element_type=jnp.float32) + b1_ref[...]
    hsum_ref[...] += jnp.maximum(h, 0.0)

    @pl.when(c == pl.num_programs(1) - 1)
    def _():
        out = jnp.dot(hsum_ref[...], w2_ref[...],
                      preferred_element_type=jnp.float32) + b2_ref[...]
        out_ref[...] = out.astype(out_ref.dtype)


# ----------------------------- wrapper ------------------------------

class UnimodalClassifierParametric:
    """Eval-mode forward of Unimodal_classifier_parametric as Pallas TPU kernels.

    Padded / transposed / mean-folded weights are prepared ONCE at construction
    and cached as device arrays (per-call weight prep previously dominated
    wall-clock at small sizes).
    """

    _MONOLITHIC_VMEM_BUDGET = 8 * 1024 * 1024   # safe under v5e's 16 MiB scoped
    _TILE_ROWS = 256                            # conservative for v7x's 32 MiB

    def __init__(self, w1, b1, w2, b2, num_clips, *,
                 compute_dtype=jnp.float32, force_tiled=False):
        f32 = jnp.float32
        w1 = jnp.asarray(w1, f32)
        b1 = jnp.asarray(b1, f32)
        w2 = jnp.asarray(w2, f32)
        b2 = jnp.asarray(b2, f32)
        H, D = w1.shape
        C = w2.shape[0]

        self.num_clips = int(num_clips)
        self.D, self.H, self.C = D, H, C
        self.Hp = _round_up(max(H, _LANE), _LANE)   # lane-dense hidden dim
        self.Cp = _round_up(max(C, _LANE), _LANE)   # lane-dense class dim
        self.compute_dtype = compute_dtype
        self.force_tiled = bool(force_tiled)

        inv_n = 1.0 / self.num_clips
        # Lane-dense zero padding; 1/num_clips folded into W2 so the clip mean
        # becomes a plain sum of hidden activations. b2 is added exactly once
        # (after the clip sum), so it stays unscaled.
        self.w1p = (jnp.zeros((D, self.Hp), f32).at[:, :H].set(w1.T)
                    .astype(compute_dtype))
        self.b1p = jnp.zeros((1, self.Hp), f32).at[0, :H].set(b1)
        self.w2p = jnp.zeros((self.Hp, self.Cp), f32).at[:H, :C].set(w2.T * inv_n)
        self.b2p = jnp.zeros((1, self.Cp), f32).at[0, :C].set(b2)

    def __call__(self, x):
        n, B, D = x.shape
        assert n == self.num_clips and D == self.D
        f32 = jnp.float32
        cdt = self.compute_dtype
        itemsize = jnp.dtype(cdt).itemsize

        Bp = _round_up(max(B, _SUBLANE), _SUBLANE)   # sublane-aligned batch
        x_bytes = n * Bp * D * itemsize
        h_bytes = n * Bp * self.Hp * 4
        use_tiled = self.force_tiled or (x_bytes + h_bytes >
                                         self._MONOLITHIC_VMEM_BUDGET)

        if not use_tiled:
            # ---- monolithic fast path: one invocation, zero grid steps ----
            xp = x.astype(cdt)
            if Bp != B:
                xp = jnp.pad(xp, ((0, 0), (0, Bp - B), (0, 0)))
            x2 = xp.reshape(n * Bp, D)

            vmem = pl.BlockSpec(memory_space=pltpu.MemorySpace.VMEM)
            out = pl.pallas_call(
                functools.partial(_fused_small_kernel, n_clips=n, rows=Bp),
                out_shape=jax.ShapeDtypeStruct((Bp, self.Cp), f32),
                in_specs=[vmem] * 5,
                out_specs=vmem,
            )(x2, self.w1p, self.b1p, self.w2p, self.b2p)
            return out[:B, :self.C], {}

        # ---- tiled path: pipelined grid over (row tiles, clips) ----
        TB = self._TILE_ROWS if Bp >= self._TILE_ROWS else Bp
        Bpp = _round_up(Bp, TB)
        xp = x.astype(cdt)
        if Bpp != B:
            xp = jnp.pad(xp, ((0, 0), (0, Bpp - B), (0, 0)))
        x2 = xp.reshape(n * Bpp, D)
        n_row_tiles = Bpp // TB

        out = pl.pallas_call(
            _fused_tiled_kernel,
            out_shape=jax.ShapeDtypeStruct((Bpp, self.Cp), f32),
            grid_spec=pltpu.PrefetchScalarGridSpec(
                num_scalar_prefetch=0,
                grid=(n_row_tiles, n),
                in_specs=[
                    # x rows are clip-major: block row index = c*n_row_tiles + b
                    pl.BlockSpec((TB, D), lambda b, c: (c * n_row_tiles + b, 0)),
                    pl.BlockSpec((D, self.Hp), lambda b, c: (0, 0)),
                    pl.BlockSpec((1, self.Hp), lambda b, c: (0, 0)),
                    pl.BlockSpec((self.Hp, self.Cp), lambda b, c: (0, 0)),
                    pl.BlockSpec((1, self.Cp), lambda b, c: (0, 0)),
                ],
                out_specs=pl.BlockSpec((TB, self.Cp), lambda b, c: (b, 0)),
                scratch_shapes=[pltpu.VMEM((TB, self.Hp), f32)],
            ),
            compiler_params=pltpu.CompilerParams(
                dimension_semantics=("parallel", "arbitrary")),
        )(x2, self.w1p, self.b1p, self.w2p, self.b2p)
        return out[:B, :self.C], {}


# ----------------------------- reference ----------------------------

def _reference(x, w1, b1, w2, b2):
    h = jnp.maximum(jnp.einsum("nbd,hd->nbh", x, w1) + b1, 0.0)
    logits = jnp.einsum("nbh,ch->nbc", h, w2) + b2
    return logits.mean(axis=0)


if __name__ == "__main__":
    # Small shapes consistent with the module: num_clips clips of (batch, input_size).
    num_clips, batch, input_size, num_classes = 4, 8, 32, 10
    hidden = input_size // 4

    key = jax.random.PRNGKey(0)
    kx, kw1, kb1, kw2, kb2 = jax.random.split(key, 5)

    x = jax.random.normal(kx, (num_clips, batch, input_size), jnp.float32)
    # Deterministic synthetic parameters (PyTorch-like uniform init scale).
    lim1 = 1.0 / (input_size ** 0.5)
    lim2 = 1.0 / (hidden ** 0.5)
    w1 = jax.random.uniform(kw1, (hidden, input_size), jnp.float32, -lim1, lim1)
    b1 = jax.random.uniform(kb1, (hidden,), jnp.float32, -lim1, lim1)
    w2 = jax.random.uniform(kw2, (num_classes, hidden), jnp.float32, -lim2, lim2)
    b2 = jax.random.uniform(kb2, (num_classes,), jnp.float32, -lim2, lim2)

    ref = _reference(x, w1, b1, w2, b2)

    # Monolithic fast path (weights padded/folded once at init).
    model = UnimodalClassifierParametric(w1, b1, w2, b2, num_clips)
    out, aux = model(x)
    out = jax.block_until_ready(out)
    assert out.shape == (batch, num_classes)
    assert jnp.allclose(out, ref, atol=1e-5, rtol=1e-5), "monolithic path mismatch"

    # Tiled / pipelined path (same numerics, exercised explicitly).
    model_tiled = UnimodalClassifierParametric(w1, b1, w2, b2, num_clips,
                                               force_tiled=True)
    out_t, _ = model_tiled(x)
    out_t = jax.block_until_ready(out_t)
    assert jnp.allclose(out_t, ref, atol=1e-5, rtol=1e-5), "tiled path mismatch"

    print("KERNEL_OK")
</pallas_src>

<mosaic_0001>
module attributes {stable_mosaic.version = 11 : i64} {
  func.func @_fused_small_kernel(%arg0: memref<32x32xf32, #tpu.memory_space<vmem>>, %arg1: memref<32x128xf32, #tpu.memory_space<vmem>>, %arg2: memref<1x128xf32, #tpu.memory_space<vmem>>, %arg3: memref<128x128xf32, #tpu.memory_space<vmem>>, %arg4: memref<1x128xf32, #tpu.memory_space<vmem>>, %arg5: memref<8x128xf32, #tpu.memory_space<vmem>>) attributes {dimension_semantics = [], scalar_prefetch = 0 : i64, scratch_operands = 0 : i64, tpu.core_type = #tpu.core_type<tc>} {
    %c0 = arith.constant 0 : index
    %c0_0 = arith.constant 0 : index
    %0 = vector.load %arg0[%c0, %c0_0] : memref<32x32xf32, #tpu.memory_space<vmem>>, vector<32x32xf32>
    %c0_1 = arith.constant 0 : index
    %c0_2 = arith.constant 0 : index
    %1 = vector.load %arg1[%c0_1, %c0_2] : memref<32x128xf32, #tpu.memory_space<vmem>>, vector<32x128xf32>
    %cst = arith.constant dense<0.000000e+00> : vector<32x128xf32>
    %2 = tpu.matmul %0, %1, %cst {dimension_numbers = #tpu.dot_dimension_numbers<[1], [0], [0], [1], [0, 0, 1, 1], [], []>} : vector<32x32xf32>, vector<32x128xf32>, vector<32x128xf32> -> vector<32x128xf32>
    %c0_3 = arith.constant 0 : index
    %c0_4 = arith.constant 0 : index
    %3 = vector.load %arg2[%c0_3, %c0_4] : memref<1x128xf32, #tpu.memory_space<vmem>>, vector<1x128xf32>
    %4 = vector.broadcast %3 : vector<1x128xf32> to vector<32x128xf32>
    %5 = arith.addf %2, %4 : vector<32x128xf32>
    %cst_5 = arith.constant 0.000000e+00 : f32
    %6 = vector.broadcast %cst_5 : f32 to vector<32x128xf32>
    %7 = arith.maximumf %5, %6 : vector<32x128xf32>
    %8 = vector.extract_strided_slice %7 {offsets = [0, 0], sizes = [8, 128], strides = [1, 1]} : vector<32x128xf32> to vector<8x128xf32>
    %9 = vector.extract_strided_slice %7 {offsets = [8, 0], sizes = [8, 128], strides = [1, 1]} : vector<32x128xf32> to vector<8x128xf32>
    %10 = arith.addf %8, %9 : vector<8x128xf32>
    %11 = vector.extract_strided_slice %7 {offsets = [16, 0], sizes = [8, 128], strides = [1, 1]} : vector<32x128xf32> to vector<8x128xf32>
    %12 = arith.addf %10, %11 : vector<8x128xf32>
    %13 = vector.extract_strided_slice %7 {offsets = [24, 0], sizes = [8, 128], strides = [1, 1]} : vector<32x128xf32> to vector<8x128xf32>
    %14 = arith.addf %12, %13 : vector<8x128xf32>
    %c0_6 = arith.constant 0 : index
    %c0_7 = arith.constant 0 : index
    %15 = vector.load %arg3[%c0_6, %c0_7] : memref<128x128xf32, #tpu.memory_space<vmem>>, vector<128x128xf32>
    %cst_8 = arith.constant dense<0.000000e+00> : vector<8x128xf32>
    %16 = tpu.matmul %14, %15, %cst_8 {dimension_numbers = #tpu.dot_dimension_numbers<[1], [0], [0], [1], [0, 0, 1, 1], [], []>} : vector<8x128xf32>, vector<128x128xf32>, vector<8x128xf32> -> vector<8x128xf32>
    %c0_9 = arith.constant 0 : index
    %c0_10 = arith.constant 0 : index
    %17 = vector.load %arg4[%c0_9, %c0_10] : memref<1x128xf32, #tpu.memory_space<vmem>>, vector<1x128xf32>
    %18 = vector.broadcast %17 : vector<1x128xf32> to vector<8x128xf32>
    %19 = arith.addf %16, %18 : vector<8x128xf32>
    %c0_11 = arith.constant 0 : index
    %c0_12 = arith.constant 0 : index
    %20 = vector.load %arg5[%c0_11, %c0_12] : memref<8x128xf32, #tpu.memory_space<vmem>>, vector<8x128xf32>
    tpu.vector_store %arg5[%c0_11, %c0_12], %19 {strides = array<i32>} : memref<8x128xf32, #tpu.memory_space<vmem>>, vector<8x128xf32>,
    return
  }
}

</mosaic_0001>

<llo_original>
// kernel: tpu_custom_call.1
$region0: #{tpu_custom_call.1}
  #allocation0 [shape = 'u32[]', space=smem, size = 0x4, offset = 0x4, fixed_abs, tag = 'smem constant byte address 0x4 - core index']
  #allocation1 [shape = 'u32[144,128]{1,0:T(1,128)}', space=vmem, size = 0x12000, scoped, tag = 'internal scratch']
  %s0 = inlined_call_operand.hbm [shape: f32[32,32], index: 0, kind: input, shape index: {}]
  %s1 = inlined_call_operand.hbm [shape: f32[32,128], index: 1, kind: input, shape index: {}]
  %s2 = inlined_call_operand.vmem [shape: f32[1,128], index: 2, kind: input, shape index: {}]
  %s3 = inlined_call_operand.hbm [shape: f32[128,128], index: 3, kind: input, shape index: {}]
  %s4 = inlined_call_operand.vmem [shape: f32[1,128], index: 4, kind: input, shape index: {}]
  %s5 = inlined_call_operand.hbm [shape: f32[8,128], index: 5, kind: output, shape index: {}]
  %s6 = sld [smem:[#allocation0]]
  $region42: #{tpu_custom_call.1} parent=0
    _
  %s8 = ssub.s32 1, %s6
  %s9 = scalar_select 0, %s8, %s6
  $region1: #{tpu_custom_call.1} parent=0
    #allocation2 [shape = 'u8[16384]{0}', space=vmem, size = 0x4000, scoped, tag = 'input window, operand 0, single buffered']
    #allocation3 [shape = 's32[1]{0}', space=sflag, size = 0x4, scoped, tag = 'scoped memory for tpu_custom_call.1']
    #allocation4 [shape = 's32[1]{0}', space=sflag, size = 0x4, scoped, tag = 'scoped memory for tpu_custom_call.1']
    #allocation5 [shape = 'u8[16384]{0}', space=vmem, size = 0x4000, scoped, tag = 'input window, operand 1, single buffered']
    #allocation6 [shape = 's32[1]{0}', space=sflag, size = 0x4, scoped, tag = 'scoped memory for tpu_custom_call.1']
    #allocation7 [shape = 'u8[65536]{0}', space=vmem, size = 0x10000, scoped, tag = 'input window, operand 3, single buffered']
    #allocation8 [shape = 'u8[4096]{0}', space=vmem, size = 0x1000, scoped, tag = 'output window, operand 0, single buffered']
    %10 = vsyncpa [#allocation3], 0
    %11 = vsyncpa [#allocation6], 0
    %12 = vsyncpa [#allocation4], 0
    // Predicated region
    $region2: #{tpu_custom_call.1} parent=1 // pred_check
      _
    $region3: #{tpu_custom_call.1} parent=1 // pred_check_branch
      %14 = sbr.rel (0) target = $region5
    $region4: #{tpu_custom_call.1} parent=1 // pred_region
      %s16 = ssub.s32 512, 512
      %17 = vsyncadd [#allocation3], %s16
      %s18 = sshll.u32 [#allocation2], 4
      %s19 = int_to_ptr.vmem [resolvable:$true] %s18
      %24 = dma.hbm_to_vmem [thread:$0]  %s0, 512, %s19, [#allocation3], 128, 128, 8
    $region5: #{tpu_custom_call.1} parent=1 // pred_fallthru
      _
    // Predicated region
    $region6: #{tpu_custom_call.1} parent=1 // pred_check
      _
    $region7: #{tpu_custom_call.1} parent=1 // pred_check_branch
      %26 = sbr.rel (0) target = $region9
    $region8: #{tpu_custom_call.1} parent=1 // pred_region
      %s28 = ssub.s32 512, 512
      %29 = vsyncadd [#allocation6], %s28
      %s30 = sshll.u32 [#allocation5], 4
      %s31 = int_to_ptr.vmem [resolvable:$true] %s30
      %36 = dma.hbm_to_vmem [thread:$0]  %s1, 512, %s31, [#allocation6], 128, 128, 8
    $region9: #{tpu_custom_call.1} parent=1 // pred_fallthru
      _
    // Predicated region
    $region10: #{tpu_custom_call.1} parent=1 // pred_check
      _
    $region11: #{tpu_custom_call.1} parent=1 // pred_check_branch
      %38 = sbr.rel (0) target = $region13
    $region12: #{tpu_custom_call.1} parent=1 // pred_region
      _
    $region13: #{tpu_custom_call.1} parent=1 // pred_fallthru
      _
    // Predicated region
    $region14: #{tpu_custom_call.1} parent=1 // pred_check
      _
    $region15: #{tpu_custom_call.1} parent=1 // pred_check_branch
      %40 = sbr.rel (0) target = $region17
    $region16: #{tpu_custom_call.1} parent=1 // pred_region
      %s42 = ssub.s32 2048, 2048
      %43 = vsyncadd [#allocation6], %s42
      %s44 = sshll.u32 [#allocation7], 4
      %s45 = int_to_ptr.vmem [resolvable:$true] %s44
      %50 = dma.hbm_to_vmem [thread:$0]  %s3, 2048, %s45, [#allocation6], 128, 128, 8
    $region17: #{tpu_custom_call.1} parent=1 // pred_fallthru
      _
    // Predicated region
    $region18: #{tpu_custom_call.1} parent=1 // pred_check
      _
    $region19: #{tpu_custom_call.1} parent=1 // pred_check_branch
      %52 = sbr.rel (0) target = $region21
    $region20: #{tpu_custom_call.1} parent=1 // pred_region
      _
    $region21: #{tpu_custom_call.1} parent=1 // pred_fallthru
      _
    // Predicated region
    $region22: #{tpu_custom_call.1} parent=1 // pred_check
      _
    $region23: #{tpu_custom_call.1} parent=1 // pred_check_branch
      %54 = sbr.rel (0) target = $region25
    $region24: #{tpu_custom_call.1} parent=1 // pred_region
      %55 = dma.done [#allocation3], 512
    $region25: #{tpu_custom_call.1} parent=1 // pred_fallthru
      _
    // Predicated region
    $region26: #{tpu_custom_call.1} parent=1 // pred_check
      _
    $region27: #{tpu_custom_call.1} parent=1 // pred_check_branch
      %57 = sbr.rel (0) target = $region29
    $region28: #{tpu_custom_call.1} parent=1 // pred_region
      %58 = dma.done [#allocation6], 512
    $region29: #{tpu_custom_call.1} parent=1 // pred_fallthru
      _
    // Predicated region
    $region30: #{tpu_custom_call.1} parent=1 // pred_check
      _
    $region31: #{tpu_custom_call.1} parent=1 // pred_check_branch
      %60 = sbr.rel (0) target = $region33
    $region32: #{tpu_custom_call.1} parent=1 // pred_region
      %61 = dma.done [#allocation6], 2048
    $region33: #{tpu_custom_call.1} parent=1 // pred_fallthru
      _
    %v62 = vld [vmem:[#allocation2] sm:$0xff]
    %v63 = vld [vmem:[#allocation2 + $0x8] sm:$0xff]
    %v64 = vld [vmem:[#allocation2 + $0x10] sm:$0xff]
    %v65 = vld [vmem:[#allocation2 + $0x18] sm:$0xff]
    %v66 = vld [vmem:[#allocation5] sm:$0xff]
    %v67 = vld [vmem:[#allocation5 + $0x8] sm:$0xff]
    %v68 = vld [vmem:[#allocation5 + $0x10] sm:$0xff]
    %v69 = vld [vmem:[#allocation5 + $0x18] sm:$0xff]
    %v70 = vld [vmem:[%s2] sm:$0x1]
    %v72 = vlaneseq
    %v73 = vshrl.u32 %v72, 7
    %v74 = vsub.s32 0, %v73
    %v75 = vrot.slane %v70, %v74
    %vm77 = vcmask 261120
    %v79 = vsel %vm77, %v62, 0
    %v82 = vsel %vm77, %v63, 0
    %v85 = vsel %vm77, %v64, 0
    %v88 = vsel %vm77, %v65, 0
    %90 = vmatprep.subr.mxu0 0.0
    %91 = vmatpush1.msra.mxu0 %v66
    %92 = vmatprep.subr.mxu0 0.0
    %93 = vmatpush1.msra.mxu0 %v67
    %94 = vmatprep.subr.mxu0 0.0
    %95 = vmatpush1.msra.mxu0 %v68
    %96 = vmatprep.subr.mxu0 0.0
    %97 = vmatpush1.msra.mxu0 %v69
    %98 = vmatprep.subr.mxu0 0.0
    %99 = vmatpush1.msra.mxu0 0.0
    %100 = vmatprep.subr.mxu0 0.0
    %101 = vmatpush1.msra.mxu0 0.0
    %102 = vmatprep.subr.mxu0 0.0
    %103 = vmatpush1.msra.mxu0 0.0
    %104 = vmatprep.subr.mxu0 0.0
    %105 = vmatpush1.msra.mxu0 0.0
    %106 = vmatprep.subr.mxu0 0.0
    %107 = vmatpush1.msra.mxu0 0.0
    %108 = vmatprep.subr.mxu0 0.0
    %109 = vmatpush1.msra.mxu0 0.0
    %110 = vmatprep.subr.mxu0 0.0
    %111 = vmatpush1.msra.mxu0 0.0
    %112 = vmatprep.subr.mxu0 0.0
    %113 = vmatpush1.msra.mxu0 0.0
    %114 = vmatprep.subr.mxu0 0.0
    %115 = vmatpush1.msra.mxu0 0.0
    %116 = vmatprep.subr.mxu0 0.0
    %117 = vmatpush1.msra.mxu0 0.0
    %118 = vmatprep.subr.mxu0 0.0
    %119 = vmatpush1.msra.mxu0 0.0
    %120 = vmatprep.subr.mxu0 0.0
    %121 = vmatpush1.msra.mxu0 0.0
    %122 = vmatprep.subr.mxu0 0.0
    %123 = vmatpush1.msra.mxu0 0.0
    %124 = vmatprep.subr.mxu0 0.0
    %125 = vmatpush1.msra.mxu0 0.0
    %126 = vmatprep.subr.mxu0 0.0
    %127 = vmatpush1.msra.mxu0 0.0
    %128 = vmatprep.subr.mxu0 0.0
    %129 = vmatpush1.msra.mxu0 0.0
    %130 = vmatprep.subr.mxu0 0.0
    %131 = vmatpush1.msra.mxu0 0.0
    %132 = vmatprep.subr.mxu0 0.0
    %133 = vmatpush1.msra.mxu0 0.0
    %134 = vmatprep.subr.mxu0 0.0
    %135 = vmatpush1.msra.mxu0 0.0
    %136 = vmatprep.subr.mxu0 0.0
    %137 = vmatpush1.msra.mxu0 0.0
    %138 = vmatprep.subr.mxu0 0.0
    %139 = vmatpush1.msra.mxu0 0.0
    %140 = vmatprep.subr.mxu0 0.0
    %141 = vmatpush1.msra.mxu0 0.0
    %142 = vmatprep.subr.mxu0 0.0
    %143 = vmatpush1.msra.mxu0 0.0
    %144 = vmatprep.subr.mxu0 0.0
    %145 = vmatpush1.msra.mxu0 0.0
    %146 = vmatprep.subr.mxu0 0.0
    %147 = vmatpush1.msra.mxu0 0.0
    %148 = vmatprep.subr.mxu0 0.0
    %149 = vmatpush1.msra.mxu0 0.0
    %150 = vmatprep.subr.mxu0 0.0
    %151 = vmatpush1.msra.mxu0 0.0
    %152 = vmatprep.subr.mxu0 0.0
    %153 = vmatpush1.msra.mxu0 0.0
    %154 = vmatprep.mubr.f32.mxu0 0.0
    %155 = vmatmul.mubr.f32.gmra.mrb[0].mxu0 %v79
    %v156 = vpop.f32.mrb[0].mxu0
    %v157 = vadd.f32 %v75, %v156
    %v158 = vpop.f32.mrb[0].mxu0
    %159 = vmatprep.mubr.f32.mxu0 0.0
    %160 = vmatmul.mubr.f32.gmra.mrb[0].mxu0 %v82
    %v161 = vpop.f32.mrb[0].mxu0
    %v162 = vadd.f32 %v75, %v161
    %v163 = vpop.f32.mrb[0].mxu0
    %164 = vmatprep.mubr.f32.mxu0 0.0
    %165 = vmatmul.mubr.f32.gmra.mrb[0].mxu0 %v85
    %v166 = vpop.f32.mrb[0].mxu0
    %v167 = vadd.f32 %v75, %v166
    %v168 = vpop.f32.mrb[0].mxu0
    %169 = vmatprep.mubr.f32.mxu0 0.0
    %170 = vmatmul.mubr.f32.gmra.mrb[0].mxu0 %v88
    %v171 = vpop.f32.mrb[0].mxu0
    %v172 = vadd.f32 %v75, %v171
    %v173 = vpop.f32.mrb[0].mxu0
    %174 = vdwg.mxu0
    %v175 = vmax.f32 %v157, 0.0
    %v176 = vmax.f32 %v162, 0.0
    %v177 = vmax.f32 %v167, 0.0
    %v178 = vmax.f32 %v172, 0.0
    %v179 = vadd.f32 %v175, %v176
    %v180 = vadd.f32 %v179, %v177
    %v181 = vadd.f32 %v180, %v178
    %v182 = vld [vmem:[#allocation7] sm:$0xff]
    %v183 = vld [vmem:[#allocation7 + $0x8] sm:$0xff]
    %v184 = vld [vmem:[#allocation7 + $0x10] sm:$0xff]
    %v185 = vld [vmem:[#allocation7 + $0x18] sm:$0xff]
    %v186 = vld [vmem:[#allocation7 + $0x20] sm:$0xff]
    %v187 = vld [vmem:[#allocation7 + $0x28] sm:$0xff]
    %v188 = vld [vmem:[#allocation7 + $0x30] sm:$0xff]
    %v189 = vld [vmem:[#allocation7 + $0x38] sm:$0xff]
    %v190 = vld [vmem:[#allocation7 + $0x40] sm:$0xff]
    %v191 = vld [vmem:[#allocation7 + $0x48] sm:$0xff]
    %v192 = vld [vmem:[#allocation7 + $0x50] sm:$0xff]
    %v193 = vld [vmem:[#allocation7 + $0x58] sm:$0xff]
    %v194 = vld [vmem:[#allocation7 + $0x60] sm:$0xff]
    %v195 = vld [vmem:[#allocation7 + $0x68] sm:$0xff]
    %v196 = vld [vmem:[#allocation7 + $0x70] sm:$0xff]
    %v197 = vld [vmem:[#allocation7 + $0x78] sm:$0xff]
    %v198 = vld [vmem:[%s4] sm:$0x1]
    %v200 = vlaneseq
    %v201 = vshrl.u32 %v200, 7
    %v202 = vsub.s32 0, %v201
    %v203 = vrot.slane %v198, %v202
    %205 = vmatprep.subr.mxu0 0.0
    %206 = vmatpush1.msra.mxu0 %v182
    %207 = vmatprep.subr.mxu0 0.0
    %208 = vmatpush1.msra.mxu0 %v183
    %209 = vmatprep.subr.mxu0 0.0
    %210 = vmatpush1.msra.mxu0 %v184
    %211 = vmatprep.subr.mxu0 0.0
    %212 = vmatpush1.msra.mxu0 %v185
    %213 = vmatprep.subr.mxu0 0.0
    %214 = vmatpush1.msra.mxu0 %v186
    %215 = vmatprep.subr.mxu0 0.0
    %216 = vmatpush1.msra.mxu0 %v187
    %217 = vmatprep.subr.mxu0 0.0
    %218 = vmatpush1.msra.mxu0 %v188
    %219 = vmatprep.subr.mxu0 0.0
    %220 = vmatpush1.msra.mxu0 %v189
    %221 = vmatprep.subr.mxu0 0.0
    %222 = vmatpush1.msra.mxu0 %v190
    %223 = vmatprep.subr.mxu0 0.0
    %224 = vmatpush1.msra.mxu0 %v191
    %225 = vmatprep.subr.mxu0 0.0
    %226 = vmatpush1.msra.mxu0 %v192
    %227 = vmatprep.subr.mxu0 0.0
    %228 = vmatpush1.msra.mxu0 %v193
    %229 = vmatprep.subr.mxu0 0.0
    %230 = vmatpush1.msra.mxu0 %v194
    %231 = vmatprep.subr.mxu0 0.0
    %232 = vmatpush1.msra.mxu0 %v195
    %233 = vmatprep.subr.mxu0 0.0
    %234 = vmatpush1.msra.mxu0 %v196
    %235 = vmatprep.subr.mxu0 0.0
    %236 = vmatpush1.msra.mxu0 %v197
    %237 = vmatprep.subr.mxu0 0.0
    %238 = vmatpush1.msra.mxu0 0.0
    %239 = vmatprep.subr.mxu0 0.0
    %240 = vmatpush1.msra.mxu0 0.0
    %241 = vmatprep.subr.mxu0 0.0
    %242 = vmatpush1.msra.mxu0 0.0
    %243 = vmatprep.subr.mxu0 0.0
    %244 = vmatpush1.msra.mxu0 0.0
    %245 = vmatprep.subr.mxu0 0.0
    %246 = vmatpush1.msra.mxu0 0.0
    %247 = vmatprep.subr.mxu0 0.0
    %248 = vmatpush1.msra.mxu0 0.0
    %249 = vmatprep.subr.mxu0 0.0
    %250 = vmatpush1.msra.mxu0 0.0
    %251 = vmatprep.subr.mxu0 0.0
    %252 = vmatpush1.msra.mxu0 0.0
    %253 = vmatprep.subr.mxu0 0.0
    %254 = vmatpush1.msra.mxu0 0.0
    %255 = vmatprep.subr.mxu0 0.0
    %256 = vmatpush1.msra.mxu0 0.0
    %257 = vmatprep.subr.mxu0 0.0
    %258 = vmatpush1.msra.mxu0 0.0
    %259 = vmatprep.subr.mxu0 0.0
    %260 = vmatpush1.msra.mxu0 0.0
    %261 = vmatprep.subr.mxu0 0.0
    %262 = vmatpush1.msra.mxu0 0.0
    %263 = vmatprep.subr.mxu0 0.0
    %264 = vmatpush1.msra.mxu0 0.0
    %265 = vmatprep.subr.mxu0 0.0
    %266 = vmatpush1.msra.mxu0 0.0
    %267 = vmatprep.subr.mxu0 0.0
    %268 = vmatpush1.msra.mxu0 0.0
    %269 = vmatprep.mubr.f32.mxu0 0.0
    %270 = vmatmul.mubr.f32.gmra.mrb[0].mxu0 %v181
    %v271 = vpop.f32.mrb[0].mxu0
    %v272 = vadd.f32 %v203, %v271
    %v273 = vpop.f32.mrb[0].mxu0
    %274 = vdwg.mxu0
    %275 = vst [vmem:[#allocation8] sm:$0xff] %v272
    // Predicated region
    $region34: #{tpu_custom_call.1} parent=1 // pred_check
      _
    $region35: #{tpu_custom_call.1} parent=1 // pred_check_branch
      %277 = sbr.rel (0) target = $region37
    $region36: #{tpu_custom_call.1} parent=1 // pred_region
      %s279 = ssub.s32 128, 128
      %280 = vsyncadd [#allocation4], %s279
      %s282 = sshll.u32 [#allocation8], 4
      %s283 = int_to_ptr.vmem [resolvable:$true] %s282
      %285 = dma.vmem_to_hbm [thread:$0]  %s283, 128, %s5, [#allocation4]
    $region37: #{tpu_custom_call.1} parent=1 // pred_fallthru
      _
    // Predicated region
    $region38: #{tpu_custom_call.1} parent=1 // pred_check
      _
    $region39: #{tpu_custom_call.1} parent=1 // pred_check_branch
      %287 = sbr.rel (0) target = $region41
    $region40: #{tpu_custom_call.1} parent=1 // pred_region
      %288 = dma.done [#allocation4], 128
    $region41: #{tpu_custom_call.1} parent=1 // pred_fallthru
      _
    %289 = vsyncpa [#allocation3], 1
    %290 = vsyncpa [#allocation6], 1
    %291 = vsyncpa [#allocation4], 1

</llo_original>
